<compile_context>
chip_gen: v7x
topology: tpu7x:2x2x1
jax: 0.10.0
libtpu: 0.0.40
codegen_flags: <defaults>
</compile_context>

<pallas_src>
import jax
import jax.numpy as jnp
from jax.experimental import pallas as pl
from jax.experimental.pallas import tpu as pltpu

_LANES = 128
_BLOCK_ROWS = 1024                          # (1024, 128) f32 block = 512 KiB / buffer
_TILED_MIN_ELEMS = (4 * 1024 * 1024) // 4   # ~4 MiB of f32 before tiling pays off


def _relu_kernel(x_ref, o_ref):
    o_ref[...] = jnp.maximum(x_ref[...], jnp.zeros((), x_ref.dtype))


def relu_pallas(x: jax.Array) -> jax.Array:
    """Elementwise ReLU matching torch.nn.ReLU(inplace=True) semantics."""
    orig_shape = x.shape
    dtype = x.dtype
    n_elem = x.size
    itemsize = jnp.dtype(dtype).itemsize
    cost = pl.CostEstimate(
        flops=n_elem, transcendentals=0, bytes_accessed=2 * itemsize * n_elem
    )

    # ---- Large, lane-divisible activations: fixed lane-dense tiles, parallel grid.
    if n_elem >= _TILED_MIN_ELEMS and n_elem % (_BLOCK_ROWS * _LANES) == 0:
        rows = n_elem // _LANES
        x2d = x.reshape(rows, _LANES)
        out2d = pl.pallas_call(
            _relu_kernel,
            out_shape=jax.ShapeDtypeStruct((rows, _LANES), dtype),
            grid_spec=pl.GridSpec(
                grid=(rows // _BLOCK_ROWS,),
                in_specs=[pl.BlockSpec((_BLOCK_ROWS, _LANES), lambda i: (i, 0))],
                out_specs=pl.BlockSpec((_BLOCK_ROWS, _LANES), lambda i: (i, 0)),
            ),
            input_output_aliases={0: 0},
            cost_estimate=cost,
            compiler_params=pltpu.CompilerParams(
                dimension_semantics=("parallel",)
            ),
        )(x2d)
        return out2d.reshape(orig_shape)

    # ---- Small / ragged case (the regnet relu47 shape [1, 672, 7, 7] lands here):
    # one full-array block, no padding, no de-pad slice.
    if x.ndim >= 3:
        cols = orig_shape[-1] * orig_shape[-2]   # 7*7 = 49 for the spec shape
        rows = n_elem // cols                    # 672
    elif x.ndim == 2:
        rows, cols = orig_shape
    else:
        rows, cols = 1, max(n_elem, 1)

    x2d = x.reshape(rows, cols)                  # contiguous reshape: free

    out2d = pl.pallas_call(
        _relu_kernel,
        out_shape=jax.ShapeDtypeStruct((rows, cols), dtype),
        grid_spec=pl.GridSpec(
            grid=(1,),
            in_specs=[pl.BlockSpec((rows, cols), lambda i: (0, 0))],
            out_specs=pl.BlockSpec((rows, cols), lambda i: (0, 0)),
        ),
        # True in-place: alias the (un-padded) input buffer to the output.
        input_output_aliases={0: 0},
        cost_estimate=cost,
        compiler_params=pltpu.CompilerParams(
            dimension_semantics=("arbitrary",)
        ),
    )(x2d)

    return out2d.reshape(orig_shape)


if __name__ == "__main__":
    key = jax.random.PRNGKey(0)
    # Same shape as the reference module's example input: [1, 672, 7, 7].
    x = jax.random.normal(key, (1, 672, 7, 7), dtype=jnp.float32)

    y = relu_pallas(x)
    jax.block_until_ready(y)

    # Sanity check against the pure-JAX reference.
    y_ref = jnp.maximum(x, 0.0)
    assert y.shape == x.shape and y.dtype == x.dtype
    assert jnp.allclose(y, y_ref), "mismatch vs reference ReLU"

    print("KERNEL_OK")
</pallas_src>

<mosaic_0001>
module attributes {stable_mosaic.version = 11 : i64} {
  func.func @_relu_kernel(%arg0: i32, %arg1: memref<672x49xf32, #tpu.memory_space<vmem>>, %arg2: memref<672x49xf32, #tpu.memory_space<vmem>>) attributes {dimension_semantics = [#tpu.dimension_semantics<arbitrary>], iteration_bounds = array<i64: 1>, scalar_prefetch = 0 : i64, scratch_operands = 0 : i64, tpu.core_type = #tpu.core_type<tc>, window_params = [{pipeline_mode = #tpu.pipeline_mode<synchronous>, transform_indices = @transform_0, window_bounds = array<i64: 672, 49>}, {pipeline_mode = #tpu.pipeline_mode<synchronous>, transform_indices = @transform_1, window_bounds = array<i64: 672, 49>}]} {
    %c0 = arith.constant 0 : index
    %c0_0 = arith.constant 0 : index
    %0 = vector.load %arg1[%c0, %c0_0] : memref<672x49xf32, #tpu.memory_space<vmem>>, vector<672x49xf32>
    %cst = arith.constant 0.000000e+00 : f32
    %1 = vector.broadcast %cst : f32 to vector<672x49xf32>
    %2 = arith.maximumf %0, %1 : vector<672x49xf32>
    %c0_1 = arith.constant 0 : index
    %c0_2 = arith.constant 0 : index
    %3 = vector.load %arg2[%c0_1, %c0_2] : memref<672x49xf32, #tpu.memory_space<vmem>>, vector<672x49xf32>
    tpu.vector_store %arg2[%c0_1, %c0_2], %2 {strides = array<i32>} : memref<672x49xf32, #tpu.memory_space<vmem>>, vector<672x49xf32>,
    return
  }
  func.func @transform_0(%arg0: i32) -> (i32, i32) {
    %c0_i32 = arith.constant 0 : i32
    %c0_i32_0 = arith.constant 0 : i32
    %c0_i32_1 = arith.constant 0 : i32
    return %c0_i32, %c0_i32_0 : i32, i32
  }
  func.func @transform_1(%arg0: i32) -> (i32, i32) {
    %c0_i32 = arith.constant 0 : i32
    %c0_i32_0 = arith.constant 0 : i32
    %c0_i32_1 = arith.constant 0 : i32
    return %c0_i32, %c0_i32_0 : i32, i32
  }
}

</mosaic_0001>

<llo_original>
// kernel: tpu_custom_call.1
$region0: #{tpu_custom_call.1}
  #allocation0 [shape = 'u32[]', space=smem, size = 0x4, offset = 0x4, fixed_abs, tag = 'smem constant byte address 0x4 - core index']
  #allocation1 [shape = 'u32[144,128]{1,0:T(1,128)}', space=vmem, size = 0x12000, scoped, tag = 'internal scratch']
  %s0 = inlined_call_operand.vmem [shape: f32[672,49], index: 0, kind: input, shape index: {}, may-alias: {0,1}]
  %s1 = inlined_call_operand.vmem [shape: f32[672,49], index: 1, kind: output, shape index: {}, may-alias: {0,1}]
  %s2 = sld [smem:[#allocation0]]
  $region14: #{tpu_custom_call.1} parent=0
    _
  %s4 = ssub.s32 1, %s2
  %s5 = scalar_select 0, %s4, %s2
  // Predicated region
  $region2: #{tpu_custom_call.1} parent=0 // pred_check
    _
  $region3: #{tpu_custom_call.1} parent=0 // pred_check_branch
    %7 = sbr.rel (0) target = $region5
  $region4: #{tpu_custom_call.1} parent=0 // pred_region
    _
  $region5: #{tpu_custom_call.1} parent=0 // pred_fallthru
    _
  %v8 = vld [vmem:[%s0] sm:$0xff]
  %v9 = vld [vmem:[%s0 + $0x8] sm:$0xff]
  %v10 = vld [vmem:[%s0 + $0x10] sm:$0xff]
  %v11 = vld [vmem:[%s0 + $0x18] sm:$0xff]
  %v12 = vld [vmem:[%s0 + $0x20] sm:$0xff]
  %v13 = vld [vmem:[%s0 + $0x28] sm:$0xff]
  %v14 = vld [vmem:[%s0 + $0x30] sm:$0xff]
  %v15 = vld [vmem:[%s0 + $0x38] sm:$0xff]
  %v16 = vld [vmem:[%s0 + $0x40] sm:$0xff]
  %v17 = vld [vmem:[%s0 + $0x48] sm:$0xff]
  %v18 = vld [vmem:[%s0 + $0x50] sm:$0xff]
  %v19 = vld [vmem:[%s0 + $0x58] sm:$0xff]
  %v20 = vld [vmem:[%s0 + $0x60] sm:$0xff]
  %v21 = vld [vmem:[%s0 + $0x68] sm:$0xff]
  %v22 = vld [vmem:[%s0 + $0x70] sm:$0xff]
  %v23 = vld [vmem:[%s0 + $0x78] sm:$0xff]
  %v24 = vld [vmem:[%s0 + $0x80] sm:$0xff]
  %v25 = vld [vmem:[%s0 + $0x88] sm:$0xff]
  %v26 = vld [vmem:[%s0 + $0x90] sm:$0xff]
  %v27 = vld [vmem:[%s0 + $0x98] sm:$0xff]
  %v28 = vld [vmem:[%s0 + $0xa0] sm:$0xff]
  %v29 = vld [vmem:[%s0 + $0xa8] sm:$0xff]
  %v30 = vld [vmem:[%s0 + $0xb0] sm:$0xff]
  %v31 = vld [vmem:[%s0 + $0xb8] sm:$0xff]
  %v32 = vld [vmem:[%s0 + $0xc0] sm:$0xff]
  %v33 = vld [vmem:[%s0 + $0xc8] sm:$0xff]
  %v34 = vld [vmem:[%s0 + $0xd0] sm:$0xff]
  %v35 = vld [vmem:[%s0 + $0xd8] sm:$0xff]
  %v36 = vld [vmem:[%s0 + $0xe0] sm:$0xff]
  %v37 = vld [vmem:[%s0 + $0xe8] sm:$0xff]
  %v38 = vld [vmem:[%s0 + $0xf0] sm:$0xff]
  %v39 = vld [vmem:[%s0 + $0xf8] sm:$0xff]
  %v40 = vld [vmem:[%s0 + $0x100] sm:$0xff]
  %v41 = vld [vmem:[%s0 + $0x108] sm:$0xff]
  %v42 = vld [vmem:[%s0 + $0x110] sm:$0xff]
  %v43 = vld [vmem:[%s0 + $0x118] sm:$0xff]
  %v44 = vld [vmem:[%s0 + $0x120] sm:$0xff]
  %v45 = vld [vmem:[%s0 + $0x128] sm:$0xff]
  %v46 = vld [vmem:[%s0 + $0x130] sm:$0xff]
  %v47 = vld [vmem:[%s0 + $0x138] sm:$0xff]
  %v48 = vld [vmem:[%s0 + $0x140] sm:$0xff]
  %v49 = vld [vmem:[%s0 + $0x148] sm:$0xff]
  %v50 = vld [vmem:[%s0 + $0x150] sm:$0xff]
  %v51 = vld [vmem:[%s0 + $0x158] sm:$0xff]
  %v52 = vld [vmem:[%s0 + $0x160] sm:$0xff]
  %v53 = vld [vmem:[%s0 + $0x168] sm:$0xff]
  %v54 = vld [vmem:[%s0 + $0x170] sm:$0xff]
  %v55 = vld [vmem:[%s0 + $0x178] sm:$0xff]
  %v56 = vld [vmem:[%s0 + $0x180] sm:$0xff]
  %v57 = vld [vmem:[%s0 + $0x188] sm:$0xff]
  %v58 = vld [vmem:[%s0 + $0x190] sm:$0xff]
  %v59 = vld [vmem:[%s0 + $0x198] sm:$0xff]
  %v60 = vld [vmem:[%s0 + $0x1a0] sm:$0xff]
  %v61 = vld [vmem:[%s0 + $0x1a8] sm:$0xff]
  %v62 = vld [vmem:[%s0 + $0x1b0] sm:$0xff]
  %v63 = vld [vmem:[%s0 + $0x1b8] sm:$0xff]
  %v64 = vld [vmem:[%s0 + $0x1c0] sm:$0xff]
  %v65 = vld [vmem:[%s0 + $0x1c8] sm:$0xff]
  %v66 = vld [vmem:[%s0 + $0x1d0] sm:$0xff]
  %v67 = vld [vmem:[%s0 + $0x1d8] sm:$0xff]
  %v68 = vld [vmem:[%s0 + $0x1e0] sm:$0xff]
  %v69 = vld [vmem:[%s0 + $0x1e8] sm:$0xff]
  %v70 = vld [vmem:[%s0 + $0x1f0] sm:$0xff]
  %v71 = vld [vmem:[%s0 + $0x1f8] sm:$0xff]
  %v72 = vld [vmem:[%s0 + $0x200] sm:$0xff]
  %v73 = vld [vmem:[%s0 + $0x208] sm:$0xff]
  %v74 = vld [vmem:[%s0 + $0x210] sm:$0xff]
  %v75 = vld [vmem:[%s0 + $0x218] sm:$0xff]
  %v76 = vld [vmem:[%s0 + $0x220] sm:$0xff]
  %v77 = vld [vmem:[%s0 + $0x228] sm:$0xff]
  %v78 = vld [vmem:[%s0 + $0x230] sm:$0xff]
  %v79 = vld [vmem:[%s0 + $0x238] sm:$0xff]
  %v80 = vld [vmem:[%s0 + $0x240] sm:$0xff]
  %v81 = vld [vmem:[%s0 + $0x248] sm:$0xff]
  %v82 = vld [vmem:[%s0 + $0x250] sm:$0xff]
  %v83 = vld [vmem:[%s0 + $0x258] sm:$0xff]
  %v84 = vld [vmem:[%s0 + $0x260] sm:$0xff]
  %v85 = vld [vmem:[%s0 + $0x268] sm:$0xff]
  %v86 = vld [vmem:[%s0 + $0x270] sm:$0xff]
  %v87 = vld [vmem:[%s0 + $0x278] sm:$0xff]
  %v88 = vld [vmem:[%s0 + $0x280] sm:$0xff]
  %v89 = vld [vmem:[%s0 + $0x288] sm:$0xff]
  %v90 = vld [vmem:[%s0 + $0x290] sm:$0xff]
  %v91 = vld [vmem:[%s0 + $0x298] sm:$0xff]
  %v92 = vmax.f32 %v8, 0.0
  %v93 = vmax.f32 %v9, 0.0
  %v94 = vmax.f32 %v10, 0.0
  %v95 = vmax.f32 %v11, 0.0
  %v96 = vmax.f32 %v12, 0.0
  %v97 = vmax.f32 %v13, 0.0
  %v98 = vmax.f32 %v14, 0.0
  %v99 = vmax.f32 %v15, 0.0
  %v100 = vmax.f32 %v16, 0.0
  %v101 = vmax.f32 %v17, 0.0
  %v102 = vmax.f32 %v18, 0.0
  %v103 = vmax.f32 %v19, 0.0
  %v104 = vmax.f32 %v20, 0.0
  %v105 = vmax.f32 %v21, 0.0
  %v106 = vmax.f32 %v22, 0.0
  %v107 = vmax.f32 %v23, 0.0
  %v108 = vmax.f32 %v24, 0.0
  %v109 = vmax.f32 %v25, 0.0
  %v110 = vmax.f32 %v26, 0.0
  %v111 = vmax.f32 %v27, 0.0
  %v112 = vmax.f32 %v28, 0.0
  %v113 = vmax.f32 %v29, 0.0
  %v114 = vmax.f32 %v30, 0.0
  %v115 = vmax.f32 %v31, 0.0
  %v116 = vmax.f32 %v32, 0.0
  %v117 = vmax.f32 %v33, 0.0
  %v118 = vmax.f32 %v34, 0.0
  %v119 = vmax.f32 %v35, 0.0
  %v120 = vmax.f32 %v36, 0.0
  %v121 = vmax.f32 %v37, 0.0
  %v122 = vmax.f32 %v38, 0.0
  %v123 = vmax.f32 %v39, 0.0
  %v124 = vmax.f32 %v40, 0.0
  %v125 = vmax.f32 %v41, 0.0
  %v126 = vmax.f32 %v42, 0.0
  %v127 = vmax.f32 %v43, 0.0
  %v128 = vmax.f32 %v44, 0.0
  %v129 = vmax.f32 %v45, 0.0
  %v130 = vmax.f32 %v46, 0.0
  %v131 = vmax.f32 %v47, 0.0
  %v132 = vmax.f32 %v48, 0.0
  %v133 = vmax.f32 %v49, 0.0
  %v134 = vmax.f32 %v50, 0.0
  %v135 = vmax.f32 %v51, 0.0
  %v136 = vmax.f32 %v52, 0.0
  %v137 = vmax.f32 %v53, 0.0
  %v138 = vmax.f32 %v54, 0.0
  %v139 = vmax.f32 %v55, 0.0
  %v140 = vmax.f32 %v56, 0.0
  %v141 = vmax.f32 %v57, 0.0
  %v142 = vmax.f32 %v58, 0.0
  %v143 = vmax.f32 %v59, 0.0
  %v144 = vmax.f32 %v60, 0.0
  %v145 = vmax.f32 %v61, 0.0
  %v146 = vmax.f32 %v62, 0.0
  %v147 = vmax.f32 %v63, 0.0
  %v148 = vmax.f32 %v64, 0.0
  %v149 = vmax.f32 %v65, 0.0
  %v150 = vmax.f32 %v66, 0.0
  %v151 = vmax.f32 %v67, 0.0
  %v152 = vmax.f32 %v68, 0.0
  %v153 = vmax.f32 %v69, 0.0
  %v154 = vmax.f32 %v70, 0.0
  %v155 = vmax.f32 %v71, 0.0
  %v156 = vmax.f32 %v72, 0.0
  %v157 = vmax.f32 %v73, 0.0
  %v158 = vmax.f32 %v74, 0.0
  %v159 = vmax.f32 %v75, 0.0
  %v160 = vmax.f32 %v76, 0.0
  %v161 = vmax.f32 %v77, 0.0
  %v162 = vmax.f32 %v78, 0.0
  %v163 = vmax.f32 %v79, 0.0
  %v164 = vmax.f32 %v80, 0.0
  %v165 = vmax.f32 %v81, 0.0
  %v166 = vmax.f32 %v82, 0.0
  %v167 = vmax.f32 %v83, 0.0
  %v168 = vmax.f32 %v84, 0.0
  %v169 = vmax.f32 %v85, 0.0
  %v170 = vmax.f32 %v86, 0.0
  %v171 = vmax.f32 %v87, 0.0
  %v172 = vmax.f32 %v88, 0.0
  %v173 = vmax.f32 %v89, 0.0
  %v174 = vmax.f32 %v90, 0.0
  %v175 = vmax.f32 %v91, 0.0
  %vm176 = vcmask 400384
  %177 = vst.msk [vmem:[%s1] sm:$0xff] %vm176, %v92
  %178 = vst.msk [vmem:[%s1 + $0x8] sm:$0xff] %vm176, %v93
  %179 = vst.msk [vmem:[%s1 + $0x10] sm:$0xff] %vm176, %v94
  %180 = vst.msk [vmem:[%s1 + $0x18] sm:$0xff] %vm176, %v95
  %181 = vst.msk [vmem:[%s1 + $0x20] sm:$0xff] %vm176, %v96
  %182 = vst.msk [vmem:[%s1 + $0x28] sm:$0xff] %vm176, %v97
  %183 = vst.msk [vmem:[%s1 + $0x30] sm:$0xff] %vm176, %v98
  %184 = vst.msk [vmem:[%s1 + $0x38] sm:$0xff] %vm176, %v99
  %185 = vst.msk [vmem:[%s1 + $0x40] sm:$0xff] %vm176, %v100
  %186 = vst.msk [vmem:[%s1 + $0x48] sm:$0xff] %vm176, %v101
  %187 = vst.msk [vmem:[%s1 + $0x50] sm:$0xff] %vm176, %v102
  %188 = vst.msk [vmem:[%s1 + $0x58] sm:$0xff] %vm176, %v103
  %189 = vst.msk [vmem:[%s1 + $0x60] sm:$0xff] %vm176, %v104
  %190 = vst.msk [vmem:[%s1 + $0x68] sm:$0xff] %vm176, %v105
  %191 = vst.msk [vmem:[%s1 + $0x70] sm:$0xff] %vm176, %v106
  %192 = vst.msk [vmem:[%s1 + $0x78] sm:$0xff] %vm176, %v107
  %193 = vst.msk [vmem:[%s1 + $0x80] sm:$0xff] %vm176, %v108
  %194 = vst.msk [vmem:[%s1 + $0x88] sm:$0xff] %vm176, %v109
  %195 = vst.msk [vmem:[%s1 + $0x90] sm:$0xff] %vm176, %v110
  %196 = vst.msk [vmem:[%s1 + $0x98] sm:$0xff] %vm176, %v111
  %197 = vst.msk [vmem:[%s1 + $0xa0] sm:$0xff] %vm176, %v112
  %198 = vst.msk [vmem:[%s1 + $0xa8] sm:$0xff] %vm176, %v113
  %199 = vst.msk [vmem:[%s1 + $0xb0] sm:$0xff] %vm176, %v114
  %200 = vst.msk [vmem:[%s1 + $0xb8] sm:$0xff] %vm176, %v115
  %201 = vst.msk [vmem:[%s1 + $0xc0] sm:$0xff] %vm176, %v116
  %202 = vst.msk [vmem:[%s1 + $0xc8] sm:$0xff] %vm176, %v117
  %203 = vst.msk [vmem:[%s1 + $0xd0] sm:$0xff] %vm176, %v118
  %204 = vst.msk [vmem:[%s1 + $0xd8] sm:$0xff] %vm176, %v119
  %205 = vst.msk [vmem:[%s1 + $0xe0] sm:$0xff] %vm176, %v120
  %206 = vst.msk [vmem:[%s1 + $0xe8] sm:$0xff] %vm176, %v121
  %207 = vst.msk [vmem:[%s1 + $0xf0] sm:$0xff] %vm176, %v122
  %208 = vst.msk [vmem:[%s1 + $0xf8] sm:$0xff] %vm176, %v123
  %209 = vst.msk [vmem:[%s1 + $0x100] sm:$0xff] %vm176, %v124
  %210 = vst.msk [vmem:[%s1 + $0x108] sm:$0xff] %vm176, %v125
  %211 = vst.msk [vmem:[%s1 + $0x110] sm:$0xff] %vm176, %v126
  %212 = vst.msk [vmem:[%s1 + $0x118] sm:$0xff] %vm176, %v127
  %213 = vst.msk [vmem:[%s1 + $0x120] sm:$0xff] %vm176, %v128
  %214 = vst.msk [vmem:[%s1 + $0x128] sm:$0xff] %vm176, %v129
  %215 = vst.msk [vmem:[%s1 + $0x130] sm:$0xff] %vm176, %v130
  %216 = vst.msk [vmem:[%s1 + $0x138] sm:$0xff] %vm176, %v131
  %217 = vst.msk [vmem:[%s1 + $0x140] sm:$0xff] %vm176, %v132
  %218 = vst.msk [vmem:[%s1 + $0x148] sm:$0xff] %vm176, %v133
  %219 = vst.msk [vmem:[%s1 + $0x150] sm:$0xff] %vm176, %v134
  %220 = vst.msk [vmem:[%s1 + $0x158] sm:$0xff] %vm176, %v135
  %221 = vst.msk [vmem:[%s1 + $0x160] sm:$0xff] %vm176, %v136
  %222 = vst.msk [vmem:[%s1 + $0x168] sm:$0xff] %vm176, %v137
  %223 = vst.msk [vmem:[%s1 + $0x170] sm:$0xff] %vm176, %v138
  %224 = vst.msk [vmem:[%s1 + $0x178] sm:$0xff] %vm176, %v139
  %225 = vst.msk [vmem:[%s1 + $0x180] sm:$0xff] %vm176, %v140
  %226 = vst.msk [vmem:[%s1 + $0x188] sm:$0xff] %vm176, %v141
  %227 = vst.msk [vmem:[%s1 + $0x190] sm:$0xff] %vm176, %v142
  %228 = vst.msk [vmem:[%s1 + $0x198] sm:$0xff] %vm176, %v143
  %229 = vst.msk [vmem:[%s1 + $0x1a0] sm:$0xff] %vm176, %v144
  %230 = vst.msk [vmem:[%s1 + $0x1a8] sm:$0xff] %vm176, %v145
  %231 = vst.msk [vmem:[%s1 + $0x1b0] sm:$0xff] %vm176, %v146
  %232 = vst.msk [vmem:[%s1 + $0x1b8] sm:$0xff] %vm176, %v147
  %233 = vst.msk [vmem:[%s1 + $0x1c0] sm:$0xff] %vm176, %v148
  %234 = vst.msk [vmem:[%s1 + $0x1c8] sm:$0xff] %vm176, %v149
  %235 = vst.msk [vmem:[%s1 + $0x1d0] sm:$0xff] %vm176, %v150
  %236 = vst.msk [vmem:[%s1 + $0x1d8] sm:$0xff] %vm176, %v151
  %237 = vst.msk [vmem:[%s1 + $0x1e0] sm:$0xff] %vm176, %v152
  %238 = vst.msk [vmem:[%s1 + $0x1e8] sm:$0xff] %vm176, %v153
  %239 = vst.msk [vmem:[%s1 + $0x1f0] sm:$0xff] %vm176, %v154
  %240 = vst.msk [vmem:[%s1 + $0x1f8] sm:$0xff] %vm176, %v155
  %241 = vst.msk [vmem:[%s1 + $0x200] sm:$0xff] %vm176, %v156
  %242 = vst.msk [vmem:[%s1 + $0x208] sm:$0xff] %vm176, %v157
  %243 = vst.msk [vmem:[%s1 + $0x210] sm:$0xff] %vm176, %v158
  %244 = vst.msk [vmem:[%s1 + $0x218] sm:$0xff] %vm176, %v159
  %245 = vst.msk [vmem:[%s1 + $0x220] sm:$0xff] %vm176, %v160
  %246 = vst.msk [vmem:[%s1 + $0x228] sm:$0xff] %vm176, %v161
  %247 = vst.msk [vmem:[%s1 + $0x230] sm:$0xff] %vm176, %v162
  %248 = vst.msk [vmem:[%s1 + $0x238] sm:$0xff] %vm176, %v163
  %249 = vst.msk [vmem:[%s1 + $0x240] sm:$0xff] %vm176, %v164
  %250 = vst.msk [vmem:[%s1 + $0x248] sm:$0xff] %vm176, %v165
  %251 = vst.msk [vmem:[%s1 + $0x250] sm:$0xff] %vm176, %v166
  %252 = vst.msk [vmem:[%s1 + $0x258] sm:$0xff] %vm176, %v167
  %253 = vst.msk [vmem:[%s1 + $0x260] sm:$0xff] %vm176, %v168
  %254 = vst.msk [vmem:[%s1 + $0x268] sm:$0xff] %vm176, %v169
  %255 = vst.msk [vmem:[%s1 + $0x270] sm:$0xff] %vm176, %v170
  %256 = vst.msk [vmem:[%s1 + $0x278] sm:$0xff] %vm176, %v171
  %257 = vst.msk [vmem:[%s1 + $0x280] sm:$0xff] %vm176, %v172
  %258 = vst.msk [vmem:[%s1 + $0x288] sm:$0xff] %vm176, %v173
  %259 = vst.msk [vmem:[%s1 + $0x290] sm:$0xff] %vm176, %v174
  %260 = vst.msk [vmem:[%s1 + $0x298] sm:$0xff] %vm176, %v175
  // Predicated region
  $region6: #{tpu_custom_call.1} parent=0 // pred_check
    _
  $region7: #{tpu_custom_call.1} parent=0 // pred_check_branch
    %262 = sbr.rel (0) target = $region9
  $region8: #{tpu_custom_call.1} parent=0 // pred_region
    _
  $region9: #{tpu_custom_call.1} parent=0 // pred_fallthru
    _
  // Predicated region
  $region10: #{tpu_custom_call.1} parent=0 // pred_check
    _
  $region11: #{tpu_custom_call.1} parent=0 // pred_check_branch
    %264 = sbr.rel (0) target = $region13
  $region12: #{tpu_custom_call.1} parent=0 // pred_region
    _
  $region13: #{tpu_custom_call.1} parent=0 // pred_fallthru
    _

</llo_original>
